<compile_context>
chip_gen: v6e
topology: v6e:2x2x1
jax: 0.10.0
libtpu: 0.0.40
codegen_flags: <defaults>
</compile_context>

<pallas_src>
import functools

import jax
import jax.numpy as jnp
from jax.experimental import pallas as pl
from jax.experimental.pallas import tpu as pltpu


def _round_up(x, m):
    return ((x + m - 1) // m) * m


def _focal_partial_kernel(logit_ref, target_ref, *rest, gamma, has_weights):
    if has_weights:
        w_ref, out_ref = rest
    else:
        (out_ref,) = rest
        w_ref = None

    x = logit_ref[...].astype(jnp.float32)
    t = target_ref[...].astype(jnp.float32)

    # Stable BCE-with-logits, identical to the PyTorch max_val formulation:
    #   x - x*t + max(-x,0) + log(exp(-max_val) + exp(-x - max_val))
    #   == max(x,0) - x*t + log1p(exp(-|x|))
    e = jnp.exp(-jnp.abs(x))
    bce = jnp.maximum(x, 0.0) - x * t + jnp.log1p(e)

    # Focal modulator (module semantics, valid for arbitrary float targets):
    #   exp(gamma * logsigmoid(-x*(2t-1))) == sigmoid(x*(1-2t))**gamma
    z = x * (1.0 - 2.0 * t)
    ez = jnp.exp(-jnp.abs(z))
    if gamma == 2:
        # sigmoid(z) from exp(-|z|) with an approximate EUP reciprocal,
        # squared on the VPU -- no extra exp/log/pow.
        r = pl.reciprocal(1.0 + ez, approx=True)
        s = jnp.where(z >= 0.0, r, ez * r)
        mod = s * s
    else:
        mod = jnp.exp(gamma * (jnp.minimum(z, 0.0) - jnp.log1p(ez)))

    loss = mod * bce
    if w_ref is not None:
        loss = loss * w_ref[...].astype(jnp.float32)

    rows = loss.shape[0]
    # Fold the tile's rows into a single (8,128) vreg of partial sums
    # (layout-preserving reshape + VPU adds only; no XLU cross-lane reduce).
    out_ref[...] = jnp.sum(loss.reshape(rows // 8, 8, 128), axis=0)


def focal_loss(logit, target, *, gamma=2, weights=None, block_rows=1024):
    """Pallas TPU implementation of FocalLoss.forward.

    logit, target: same shape, any float/int dtype (cast to f32 in-kernel).
    weights: optional per-class weight vector, applied only when the inputs are
    2-D [B, C] (matching the PyTorch module); weights=None behaves like the
    module's default all-ones weights without streaming an extra operand.
    Returns a scalar float32.
    """
    assert logit.shape == target.shape
    assert block_rows % 8 == 0
    n = int(logit.size)
    assert n > 0

    two_d = (logit.ndim == 2)
    # Module: 2-D -> (weighted row-sum).mean over batch; otherwise plain mean.
    divisor = logit.shape[0] if two_d else n
    has_weights = two_d and (weights is not None)

    rows = -(-n // 128)
    tile_rows = min(block_rows, _round_up(rows, 8))
    padded_rows = _round_up(rows, tile_rows)
    pad = padded_rows * 128 - n
    n_blocks = padded_rows // tile_rows

    # Zero-loss padding: logit=-100, target=0 -> bce == 0 and modulator == 0.
    x2 = jnp.pad(logit.reshape(-1), (0, pad),
                 constant_values=-100.0).reshape(padded_rows, 128)
    t2 = jnp.pad(target.reshape(-1), (0, pad),
                 constant_values=0).reshape(padded_rows, 128)

    tile_spec = pl.BlockSpec((tile_rows, 128), lambda i: (i, 0))
    operands = [x2, t2]
    in_specs = [tile_spec, tile_spec]
    if has_weights:
        B, C = logit.shape
        w_full = jnp.broadcast_to(
            jnp.asarray(weights, jnp.float32)[None, :], (B, C)).reshape(-1)
        w2 = jnp.pad(w_full, (0, pad),
                     constant_values=0.0).reshape(padded_rows, 128)
        operands.append(w2)
        in_specs.append(tile_spec)

    kernel = functools.partial(
        _focal_partial_kernel, gamma=gamma, has_weights=has_weights)

    partials = pl.pallas_call(
        kernel,
        out_shape=jax.ShapeDtypeStruct((n_blocks * 8, 128), jnp.float32),
        grid_spec=pltpu.PrefetchScalarGridSpec(
            num_scalar_prefetch=0,
            grid=(n_blocks,),
            in_specs=in_specs,
            out_specs=pl.BlockSpec((8, 128), lambda i: (i, 0)),
        ),
        compiler_params=pltpu.CompilerParams(
            dimension_semantics=("parallel",)),
    )(*operands)

    # Tiny final cross-block/cross-lane reduce + normalization outside the kernel.
    return jnp.sum(partials) / jnp.float32(divisor)


def _reference_focal_loss(logit, target, gamma=2, weights=None):
    """Direct jnp transcription of the PyTorch FocalLoss.forward."""
    logit = jnp.asarray(logit, jnp.float32)
    target = jnp.asarray(target, jnp.float32)
    max_val = jnp.maximum(-logit, 0.0)
    loss = (logit - logit * target + max_val
            + jnp.log(jnp.exp(-max_val) + jnp.exp(-logit - max_val)))
    invprobs = jax.nn.log_sigmoid(-logit * (target * 2.0 - 1.0))
    loss = jnp.exp(invprobs * gamma) * loss
    if loss.ndim == 2:
        w = (jnp.ones((loss.shape[1],), jnp.float32) if weights is None
             else jnp.asarray(weights, jnp.float32))
        loss = (loss * w).sum(axis=1)
    return loss.mean()


if __name__ == "__main__":
    key = jax.random.PRNGKey(0)
    k1, k2, k3, k4, k5 = jax.random.split(key, 5)

    # Shapes consistent with the module: 24 classes (default weight vector).
    B, C = 16, 24
    logit = jax.random.normal(k1, (B, C), dtype=jnp.float32) * 2.0
    target = (jax.random.uniform(k2, (B, C)) > 0.5).astype(jnp.float32)

    out = focal_loss(logit, target)  # default: gamma=2, all-ones weights
    out = jax.block_until_ready(out)
    ref = _reference_focal_loss(logit, target)
    # rtol covers the approximate EUP reciprocal in the focal modulator.
    assert jnp.allclose(out, ref, rtol=5e-3, atol=1e-5), (out, ref)

    # Multi-block grid, padding, and non-uniform per-class weights.
    B2 = 64
    logit2 = jax.random.normal(k3, (B2, C), dtype=jnp.float32) * 3.0
    target2 = (jax.random.uniform(k4, (B2, C)) > 0.5).astype(jnp.float32)
    w = jax.random.uniform(k5, (C,), minval=0.5, maxval=1.5)
    out2 = focal_loss(logit2, target2, weights=w, block_rows=8)
    out2 = jax.block_until_ready(out2)
    ref2 = _reference_focal_loss(logit2, target2, weights=w)
    assert jnp.allclose(out2, ref2, rtol=5e-3, atol=1e-5), (out2, ref2)

    print("KERNEL_OK")
</pallas_src>

<mosaic_0001>
module attributes {stable_mosaic.version = 11 : i64} {
  func.func @_focal_partial_kernel(%arg0: i32, %arg1: memref<8x128xf32, #tpu.memory_space<vmem>>, %arg2: memref<8x128xf32, #tpu.memory_space<vmem>>, %arg3: memref<8x128xf32, #tpu.memory_space<vmem>>) attributes {dimension_semantics = [#tpu.dimension_semantics<parallel>], iteration_bounds = array<i64: 1>, scalar_prefetch = 0 : i64, scratch_operands = 0 : i64, tpu.core_type = #tpu.core_type<tc>, window_params = [{transform_indices = @transform_0, window_bounds = array<i64: 8, 128>}, {transform_indices = @transform_1, window_bounds = array<i64: 8, 128>}, {transform_indices = @transform_2, window_bounds = array<i64: 8, 128>}]} {
    %c0 = arith.constant 0 : index
    %c0_0 = arith.constant 0 : index
    %0 = vector.load %arg1[%c0, %c0_0] : memref<8x128xf32, #tpu.memory_space<vmem>>, vector<8x128xf32>
    %c0_1 = arith.constant 0 : index
    %c0_2 = arith.constant 0 : index
    %1 = vector.load %arg2[%c0_1, %c0_2] : memref<8x128xf32, #tpu.memory_space<vmem>>, vector<8x128xf32>
    %2 = math.absf %0 : vector<8x128xf32>
    %cst = arith.constant 0.000000e+00 : f32
    %3 = vector.broadcast %cst : f32 to vector<8x128xf32>
    %4 = arith.subf %3, %2 : vector<8x128xf32>
    %5 = math.exp %4 : vector<8x128xf32>
    %cst_3 = arith.constant 0.000000e+00 : f32
    %6 = vector.broadcast %cst_3 : f32 to vector<8x128xf32>
    %7 = arith.maximumf %0, %6 : vector<8x128xf32>
    %8 = arith.mulf %0, %1 : vector<8x128xf32>
    %9 = arith.subf %7, %8 : vector<8x128xf32>
    %10 = math.log1p %5 : vector<8x128xf32>
    %11 = arith.addf %9, %10 : vector<8x128xf32>
    %cst_4 = arith.constant 2.000000e+00 : f32
    %12 = vector.broadcast %cst_4 : f32 to vector<8x128xf32>
    %13 = arith.mulf %12, %1 : vector<8x128xf32>
    %cst_5 = arith.constant 1.000000e+00 : f32
    %14 = vector.broadcast %cst_5 : f32 to vector<8x128xf32>
    %15 = arith.subf %14, %13 : vector<8x128xf32>
    %16 = arith.mulf %0, %15 : vector<8x128xf32>
    %17 = math.absf %16 : vector<8x128xf32>
    %cst_6 = arith.constant 0.000000e+00 : f32
    %18 = vector.broadcast %cst_6 : f32 to vector<8x128xf32>
    %19 = arith.subf %18, %17 : vector<8x128xf32>
    %20 = math.exp %19 : vector<8x128xf32>
    %cst_7 = arith.constant 1.000000e+00 : f32
    %21 = vector.broadcast %cst_7 : f32 to vector<8x128xf32>
    %22 = arith.addf %21, %20 : vector<8x128xf32>
    %23 = tpu.reciprocal %22 {approx = true} : vector<8x128xf32> -> vector<8x128xf32>
    %cst_8 = arith.constant 0.000000e+00 : f32
    %24 = vector.broadcast %cst_8 : f32 to vector<8x128xf32>
    %25 = arith.cmpf oge, %16, %24 : vector<8x128xf32>
    %26 = arith.mulf %20, %23 : vector<8x128xf32>
    %27 = arith.select %25, %23, %26 : vector<8x128xi1>, vector<8x128xf32>
    %28 = arith.mulf %27, %27 : vector<8x128xf32>
    %29 = arith.mulf %28, %11 : vector<8x128xf32>
    %30 = vector.shape_cast %29 : vector<8x128xf32> to vector<1x8x128xf32>
    %cst_9 = arith.constant dense<0.000000e+00> : vector<8x128xf32>
    %31 = vector.multi_reduction <add>, %30, %cst_9 [0] : vector<1x8x128xf32> to vector<8x128xf32>
    %c0_10 = arith.constant 0 : index
    %c0_11 = arith.constant 0 : index
    %32 = vector.load %arg3[%c0_10, %c0_11] : memref<8x128xf32, #tpu.memory_space<vmem>>, vector<8x128xf32>
    tpu.vector_store %arg3[%c0_10, %c0_11], %31 {strides = array<i32>} : memref<8x128xf32, #tpu.memory_space<vmem>>, vector<8x128xf32>,
    return
  }
  func.func @transform_0(%arg0: i32) -> (i32, i32) {
    %c0_i32 = arith.constant 0 : i32
    %c0_i32_0 = arith.constant 0 : i32
    return %arg0, %c0_i32 : i32, i32
  }
  func.func @transform_1(%arg0: i32) -> (i32, i32) {
    %c0_i32 = arith.constant 0 : i32
    %c0_i32_0 = arith.constant 0 : i32
    return %arg0, %c0_i32 : i32, i32
  }
  func.func @transform_2(%arg0: i32) -> (i32, i32) {
    %c0_i32 = arith.constant 0 : i32
    %c0_i32_0 = arith.constant 0 : i32
    return %arg0, %c0_i32 : i32, i32
  }
}

</mosaic_0001>

<llo_original>
// kernel: tpu_custom_call.1
$region0: #{tpu_custom_call.1}
  #allocation0 [shape = 'u32[]', space=smem, size = 0x4, offset = 0x4, fixed_abs, tag = 'smem constant byte address 0x4 - core index']
  #allocation1 [shape = 'u32[144,128]{1,0:T(1,128)}', space=vmem, size = 0x12000, scoped, tag = 'internal scratch']
  %s0 = inlined_call_operand.hbm [shape: f32[8,128], index: 0, kind: input, shape index: {}]
  %s1 = inlined_call_operand.hbm [shape: f32[8,128], index: 1, kind: input, shape index: {}]
  %s2 = inlined_call_operand.hbm [shape: f32[8,128], index: 2, kind: output, shape index: {}]
  %s3 = sld [smem:[#allocation0]]
  $region26: #{tpu_custom_call.1} parent=0
    _
  %s5 = ssub.s32 1, %s3
  %s6 = scalar_select 0, %s5, %s3
  $region1: #{tpu_custom_call.1} parent=0
    #allocation2 [shape = 'u8[4096]{0}', space=vmem, size = 0x1000, scoped, tag = 'input window, operand 0, single buffered']
    #allocation3 [shape = 's32[1]{0}', space=sflag, size = 0x4, scoped, tag = 'scoped memory for tpu_custom_call.1']
    #allocation4 [shape = 's32[1]{0}', space=sflag, size = 0x4, scoped, tag = 'scoped memory for tpu_custom_call.1']
    #allocation5 [shape = 'u8[4096]{0}', space=vmem, size = 0x1000, scoped, tag = 'input window, operand 1, single buffered']
    #allocation6 [shape = 's32[1]{0}', space=sflag, size = 0x4, scoped, tag = 'scoped memory for tpu_custom_call.1']
    #allocation7 [shape = 'u8[4096]{0}', space=vmem, size = 0x1000, scoped, tag = 'output window, operand 0, single buffered']
    %7 = vsyncpa [#allocation3], 0
    %8 = vsyncpa [#allocation6], 0
    %9 = vsyncpa [#allocation4], 0
    // Predicated region
    $region2: #{tpu_custom_call.1} parent=1 // pred_check
      _
    $region3: #{tpu_custom_call.1} parent=1 // pred_check_branch
      %11 = sbr.rel (0) target = $region5
    $region4: #{tpu_custom_call.1} parent=1 // pred_region
      %s13 = ssub.s32 128, 128
      %14 = vsyncadd [#allocation3], %s13
      %s16 = sshll.u32 [#allocation2], 4
      %s17 = int_to_ptr.vmem [resolvable:$true] %s16
      %19 = dma.hbm_to_vmem [thread:$0]  %s0, 128, %s17, [#allocation3]
    $region5: #{tpu_custom_call.1} parent=1 // pred_fallthru
      _
    // Predicated region
    $region6: #{tpu_custom_call.1} parent=1 // pred_check
      _
    $region7: #{tpu_custom_call.1} parent=1 // pred_check_branch
      %21 = sbr.rel (0) target = $region9
    $region8: #{tpu_custom_call.1} parent=1 // pred_region
      %s23 = ssub.s32 128, 128
      %24 = vsyncadd [#allocation6], %s23
      %s26 = sshll.u32 [#allocation5], 4
      %s27 = int_to_ptr.vmem [resolvable:$true] %s26
      %29 = dma.hbm_to_vmem [thread:$0]  %s1, 128, %s27, [#allocation6]
    $region9: #{tpu_custom_call.1} parent=1 // pred_fallthru
      _
    // Predicated region
    $region10: #{tpu_custom_call.1} parent=1 // pred_check
      _
    $region11: #{tpu_custom_call.1} parent=1 // pred_check_branch
      %31 = sbr.rel (0) target = $region13
    $region12: #{tpu_custom_call.1} parent=1 // pred_region
      %32 = dma.done [#allocation3], 128
    $region13: #{tpu_custom_call.1} parent=1 // pred_fallthru
      _
    // Predicated region
    $region14: #{tpu_custom_call.1} parent=1 // pred_check
      _
    $region15: #{tpu_custom_call.1} parent=1 // pred_check_branch
      %34 = sbr.rel (0) target = $region17
    $region16: #{tpu_custom_call.1} parent=1 // pred_region
      %35 = dma.done [#allocation6], 128
    $region17: #{tpu_custom_call.1} parent=1 // pred_fallthru
      _
    %v36 = vld [vmem:[#allocation2] sm:$0xff]
    %v37 = vld [vmem:[#allocation5] sm:$0xff]
    %v38 = vand.u32 2147483647, %v36
    %v39 = vsub.f32 0.0, %v38
    %v40 = vmul.f32 %v39, 1.442695
    %v41 = vpow.pop %v40
    %v42 = vmax.f32 %v36, 0.0
    %v43 = vmul.f32 %v36, %v37
    %v44 = vsub.f32 %v42, %v43
    %v45 = vadd.f32 %v41, 1.0
    %v46 = vlog2.pop %v45
    %v47 = vmul.f32 %v46, 0.6931472
    %v48 = vmul.f32 -0.5, %v41
    %v49 = vadd.f32 %v48, 1.0
    %v50 = vmul.f32 %v49, %v41
    %v51 = vand.u32 2147483647, %v41
    %vm52 = vcmp.lt.f32.partialorder %v51, 0.0004427343
    %v53 = vsel %vm52, %v50, %v47
    %v54 = vadd.f32 %v44, %v53
    %v55 = vmul.f32 %v37, 2.0
    %v56 = vsub.f32 1.0, %v55
    %v57 = vmul.f32 %v36, %v56
    %v58 = vand.u32 2147483647, %v57
    %v59 = vsub.f32 0.0, %v58
    %v60 = vmul.f32 %v59, 1.442695
    %v61 = vpow.pop %v60
    %v62 = vadd.f32 %v61, 1.0
    %v63 = vrcp.pop %v62
    %vm64 = vcmp.ge.f32.partialorder %v57, 0.0
    %v65 = vmul.f32 %v61, %v63
    %v66 = vsel %vm64, %v63, %v65
    %v67 = vmul.f32 %v66, %v66
    %v68 = vmul.f32 %v67, %v54
    %v69 = vadd.f32 %v68, 0.0
    %70 = vst [vmem:[#allocation7] sm:$0xff] %v69
    // Predicated region
    $region18: #{tpu_custom_call.1} parent=1 // pred_check
      _
    $region19: #{tpu_custom_call.1} parent=1 // pred_check_branch
      %72 = sbr.rel (0) target = $region21
    $region20: #{tpu_custom_call.1} parent=1 // pred_region
      %s74 = ssub.s32 128, 128
      %75 = vsyncadd [#allocation4], %s74
      %s77 = sshll.u32 [#allocation7], 4
      %s78 = int_to_ptr.vmem [resolvable:$true] %s77
      %80 = dma.vmem_to_hbm [thread:$0]  %s78, 128, %s2, [#allocation4]
    $region21: #{tpu_custom_call.1} parent=1 // pred_fallthru
      _
    // Predicated region
    $region22: #{tpu_custom_call.1} parent=1 // pred_check
      _
    $region23: #{tpu_custom_call.1} parent=1 // pred_check_branch
      %82 = sbr.rel (0) target = $region25
    $region24: #{tpu_custom_call.1} parent=1 // pred_region
      %83 = dma.done [#allocation4], 128
    $region25: #{tpu_custom_call.1} parent=1 // pred_fallthru
      _
    %84 = vsyncpa [#allocation3], 1
    %85 = vsyncpa [#allocation6], 1
    %86 = vsyncpa [#allocation4], 1

</llo_original>
